<compile_context>
chip_gen: v7x
topology: tpu7x:2x2x1
jax: 0.10.0
libtpu: 0.0.40
codegen_flags: <defaults>
</compile_context>

<pallas_src>
import jax
import jax.numpy as jnp
from jax.experimental import pallas as pl
from jax.experimental.pallas import tpu as pltpu


_LANE = 128                             # minimum lane-aligned width
_TARGET_TILE_BYTES = 2 * 1024 * 1024    # 2 MiB/tile: 2x in + 2x out bufs = 8 MiB VMEM
_SMALL_BYTES = 1 << 20                  # below 1 MiB a plain reshape always wins


def _copy_kernel(x_ref, o_ref):
    # Identity copy of one lane-dense tile — the entire "compute" of a view.
    o_ref[...] = x_ref[...]


def _resolve_size(size, total):
    """torch.view semantics: resolve a single -1 and check element count."""
    size = tuple(int(s) for s in size)
    if -1 in size:
        neg = size.index(-1)
        known = 1
        for i, s in enumerate(size):
            if i != neg:
                known *= s
        assert known > 0 and total % known == 0, "view size incompatible with input"
        size = size[:neg] + (total // known,) + size[neg + 1:]
    else:
        prod = 1
        for s in size:
            prod *= s
        assert prod == total, "view size incompatible with input"
    return size


def _sublane_rows(dtype):
    # dtype-native sublane tile: 8 rows (4-byte), 16 (2-byte), 32 (1-byte).
    return max(8, 32 // jnp.dtype(dtype).itemsize)


def pallas_view(x, size, *, force_kernel=False):
    """Equivalent of torch.Tensor.view(size) for a C-contiguous array."""
    total = x.size
    size = _resolve_size(size, total)

    nbytes = total * x.dtype.itemsize
    # A view is metadata-only: for small arrays (or element counts that are not
    # lane-aligned) the zero-cost reshape beats any kernel launch.
    # TODO(synk): torch.view's non-contiguity error has no JAX analogue; reshape
    # semantics are used for the fallback.
    if total == 0 or total % _LANE != 0 or (nbytes < _SMALL_BYTES and not force_kernel):
        return x.reshape(size)

    # Widest lane-dense layout of the flat stream -> long contiguous DMA
    # descriptors and unmasked vst.
    lane = _LANE
    for cand in (8192, 4096, 2048, 1024, 512, 256):
        if total % cand == 0:
            lane = cand
            break
    rows = total // lane
    flat2d = x.reshape(rows, lane)

    itemsize = x.dtype.itemsize
    block_rows = max(1, _TARGET_TILE_BYTES // (lane * itemsize))
    if block_rows < rows:
        sub = _sublane_rows(x.dtype)
        block_rows = max(sub, (block_rows // sub) * sub)
    block_rows = min(block_rows, rows)   # == rows -> full-dim block (always legal)

    grid = (pl.cdiv(rows, block_rows),)  # partial last block is masked by Pallas

    out2d = pl.pallas_call(
        _copy_kernel,
        out_shape=jax.ShapeDtypeStruct((rows, lane), flat2d.dtype),
        grid=grid,
        in_specs=[pl.BlockSpec((block_rows, lane), lambda i: (i, 0))],
        out_specs=pl.BlockSpec((block_rows, lane), lambda i: (i, 0)),
        compiler_params=pltpu.CompilerParams(
            dimension_semantics=("parallel",),  # lets v7x shard the copy over 2 TCs
        ),
    )(flat2d)

    return out2d.reshape(size)


if __name__ == "__main__":
    k0, k1 = jax.random.split(jax.random.PRNGKey(0))

    # Small NCHW-style input, as would feed View((-1, 1024)) in a VAE encoder.
    x = jax.random.normal(k0, (2, 4, 16, 16), dtype=jnp.float32)
    size = (-1, 1024)
    ref = x.reshape(2, 1024)

    # Exercise the Pallas copy path explicitly (the default would take the
    # metadata-only fast path for an 8 KiB input).
    y = jax.block_until_ready(pallas_view(x, size, force_kernel=True))
    assert y.shape == (2, 1024) and y.dtype == x.dtype
    assert bool(jnp.array_equal(y, ref))

    # Fast path (what a real View of this size hits by default).
    y_fast = jax.block_until_ready(pallas_view(x, size))
    assert bool(jnp.array_equal(y_fast, ref))

    # bf16 case — checks dtype-aware tiling on the kernel path.
    xb = jax.random.normal(k1, (2, 4, 16, 48), dtype=jnp.bfloat16)
    yb = jax.block_until_ready(pallas_view(xb, (-1, 256), force_kernel=True))
    assert yb.shape == (24, 256) and yb.dtype == xb.dtype
    assert bool(jnp.array_equal(yb, xb.reshape(-1, 256)))

    print("KERNEL_OK")
</pallas_src>

<mosaic_0001>
module attributes {stable_mosaic.version = 11 : i64} {
  func.func @_copy_kernel(%arg0: i32, %arg1: memref<1x2048xf32, #tpu.memory_space<vmem>>, %arg2: memref<1x2048xf32, #tpu.memory_space<vmem>>) attributes {dimension_semantics = [#tpu.dimension_semantics<parallel>], iteration_bounds = array<i64: 1>, scalar_prefetch = 0 : i64, scratch_operands = 0 : i64, tpu.core_type = #tpu.core_type<tc>, window_params = [{transform_indices = @transform_0, window_bounds = array<i64: 1, 2048>}, {transform_indices = @transform_1, window_bounds = array<i64: 1, 2048>}]} {
    %c0 = arith.constant 0 : index
    %c0_0 = arith.constant 0 : index
    %0 = vector.load %arg1[%c0, %c0_0] : memref<1x2048xf32, #tpu.memory_space<vmem>>, vector<1x2048xf32>
    %c0_1 = arith.constant 0 : index
    %c0_2 = arith.constant 0 : index
    %1 = vector.load %arg2[%c0_1, %c0_2] : memref<1x2048xf32, #tpu.memory_space<vmem>>, vector<1x2048xf32>
    tpu.vector_store %arg2[%c0_1, %c0_2], %0 {strides = array<i32>} : memref<1x2048xf32, #tpu.memory_space<vmem>>, vector<1x2048xf32>,
    return
  }
  func.func @transform_0(%arg0: i32) -> (i32, i32) {
    %c0_i32 = arith.constant 0 : i32
    %c0_i32_0 = arith.constant 0 : i32
    return %arg0, %c0_i32 : i32, i32
  }
  func.func @transform_1(%arg0: i32) -> (i32, i32) {
    %c0_i32 = arith.constant 0 : i32
    %c0_i32_0 = arith.constant 0 : i32
    return %arg0, %c0_i32 : i32, i32
  }
}

</mosaic_0001>

<llo_original>
// kernel: tpu_custom_call.1
$region0: #{tpu_custom_call.1}
  #allocation0 [shape = 'u32[]', space=smem, size = 0x4, offset = 0x4, fixed_abs, tag = 'smem constant byte address 0x4 - core index']
  #allocation1 [shape = 'u32[144,128]{1,0:T(1,128)}', space=vmem, size = 0x12000, scoped, tag = 'internal scratch']
  %s0 = inlined_call_operand.hbm [shape: f32[1,2048], index: 0, kind: input, shape index: {}]
  %s1 = inlined_call_operand.hbm [shape: f32[1,2048], index: 1, kind: output, shape index: {}]
  %s2 = sld [smem:[#allocation0]]
  $region18: #{tpu_custom_call.1} parent=0
    _
  %s4 = ssub.s32 1, %s2
  %s5 = scalar_select 0, %s4, %s2
  $region1: #{tpu_custom_call.1} parent=0
    #allocation2 [shape = 'u8[8192]{0}', space=vmem, size = 0x2000, scoped, tag = 'input window, operand 0, single buffered']
    #allocation3 [shape = 's32[1]{0}', space=sflag, size = 0x4, scoped, tag = 'scoped memory for tpu_custom_call.1']
    #allocation4 [shape = 's32[1]{0}', space=sflag, size = 0x4, scoped, tag = 'scoped memory for tpu_custom_call.1']
    #allocation5 [shape = 'u8[8192]{0}', space=vmem, size = 0x2000, scoped, tag = 'output window, operand 0, single buffered']
    %6 = vsyncpa [#allocation3], 0
    %7 = vsyncpa [#allocation4], 0
    // Predicated region
    $region2: #{tpu_custom_call.1} parent=1 // pred_check
      _
    $region3: #{tpu_custom_call.1} parent=1 // pred_check_branch
      %9 = sbr.rel (0) target = $region5
    $region4: #{tpu_custom_call.1} parent=1 // pred_region
      %s11 = ssub.s32 256, 256
      %12 = vsyncadd [#allocation3], %s11
      %s14 = sshll.u32 [#allocation2], 4
      %s15 = int_to_ptr.vmem [resolvable:$true] %s14
      %17 = dma.hbm_to_vmem [thread:$0]  %s0, 256, %s15, [#allocation3]
    $region5: #{tpu_custom_call.1} parent=1 // pred_fallthru
      _
    // Predicated region
    $region6: #{tpu_custom_call.1} parent=1 // pred_check
      _
    $region7: #{tpu_custom_call.1} parent=1 // pred_check_branch
      %19 = sbr.rel (0) target = $region9
    $region8: #{tpu_custom_call.1} parent=1 // pred_region
      %20 = dma.done [#allocation3], 256
    $region9: #{tpu_custom_call.1} parent=1 // pred_fallthru
      _
    %v21 = vld [vmem:[#allocation2] sm:$0xff]
    %v22 = vld [vmem:[#allocation2 + $0x8] sm:$0xff]
    %23 = vst [vmem:[#allocation5] sm:$0xff] %v21
    %24 = vst [vmem:[#allocation5 + $0x8] sm:$0xff] %v22
    // Predicated region
    $region10: #{tpu_custom_call.1} parent=1 // pred_check
      _
    $region11: #{tpu_custom_call.1} parent=1 // pred_check_branch
      %26 = sbr.rel (0) target = $region13
    $region12: #{tpu_custom_call.1} parent=1 // pred_region
      %s28 = ssub.s32 256, 256
      %29 = vsyncadd [#allocation4], %s28
      %s31 = sshll.u32 [#allocation5], 4
      %s32 = int_to_ptr.vmem [resolvable:$true] %s31
      %34 = dma.vmem_to_hbm [thread:$0]  %s32, 256, %s1, [#allocation4]
    $region13: #{tpu_custom_call.1} parent=1 // pred_fallthru
      _
    // Predicated region
    $region14: #{tpu_custom_call.1} parent=1 // pred_check
      _
    $region15: #{tpu_custom_call.1} parent=1 // pred_check_branch
      %36 = sbr.rel (0) target = $region17
    $region16: #{tpu_custom_call.1} parent=1 // pred_region
      %37 = dma.done [#allocation4], 256
    $region17: #{tpu_custom_call.1} parent=1 // pred_fallthru
      _
    %38 = vsyncpa [#allocation3], 1
    %39 = vsyncpa [#allocation4], 1

</llo_original>
